<compile_context>
chip_gen: v7x
topology: tpu7x:2x2x1
jax: 0.10.0
libtpu: 0.0.40
codegen_flags: <defaults>
</compile_context>

<pallas_src>
import functools

import numpy as np

import jax
import jax.numpy as jnp
from jax.experimental import pallas as pl
from jax.experimental.pallas import tpu as pltpu


@functools.lru_cache(maxsize=None)
def _build_filter(C: int, H: int, W: int, k: int, Bg: int):
    """pallas_call for one (image shape, kernel size, group size) configuration.

    Sigmas are runtime SMEM scalars, so only shapes and k key this cache
    (at most two k variants: 3 and 5).
    """
    pad = k // 2
    Hp, Wp = H + 2 * pad, W + 2 * pad
    kk = k * k

    def kernel(scal_ref, x_ref, o_ref, xp_ref):
        # scal_ref: (Bg, kk+1) f32 in SMEM.  [b, :kk] = normalized spatial
        #           gaussian (row-major over (di, dj)), [b, kk] = 1/(2*sigma2^2).
        # x_ref:    (1, C, H, W) f32 block for the current batch element.
        # xp_ref:   (C, Hp, Wp) f32 VMEM scratch holding the zero-padded image.
        b = pl.program_id(0)
        inv2s2 = scal_ref[b, kk]

        # In-kernel zero padding (no wrapper-side jnp.pad HBM round trip).
        # Zero the whole (tiny) scratch every iteration: with the batch axis
        # marked "parallel" a "zero only at b==0" trick would be unsafe on the
        # second core, and the full-tile store costs only ~C*Hp*Wp*4 bytes.
        xp_ref[...] = jnp.zeros_like(xp_ref)
        xp_ref[:, pad:pad + H, pad:pad + W] = x_ref[0].astype(jnp.float32)
        xp = xp_ref[...]

        mean_pad = jnp.mean(xp, axis=0)                  # (Hp, Wp) channel-mean
        center = mean_pad[pad:pad + H, pad:pad + W]      # (H, W)

        sw_sum = jnp.zeros((H, W), jnp.float32)          # sum_t space_t*color_t
        c_sum = jnp.zeros((H, W), jnp.float32)           # sum_t color_t (eps parity)
        acc = jnp.zeros((C, H, W), jnp.float32)

        # Single fused pass over all k*k taps (k is a Python constant, so this
        # unrolls; per-tap shifts are static slices of VMEM-resident planes).
        for di in range(k):
            # Hoist the sublane (row) shift out of the inner loop.
            mean_row = mean_pad[di:di + H, :]            # (H, Wp)
            x_row = xp[:, di:di + H, :]                  # (C, H, Wp)
            for dj in range(k):
                nb = mean_row[:, dj:dj + W]              # (H, W) neighbor mean
                if di == pad and dj == pad:
                    # Center tap: exp(0) == 1 — skip the EUP op.
                    ck = jnp.ones((H, W), jnp.float32)
                else:
                    diff = nb - center
                    ck = jnp.exp(-(diff * diff) * inv2s2)
                w = scal_ref[b, di * k + dj] * ck        # space * color
                sw_sum = sw_sum + w
                c_sum = c_sum + ck
                acc = acc + x_row[:, :, dj:dj + W] * w[None, :, :]

        # Reference: weight = space*color/csum; weight /= (weight.sum + 1e-8)
        #   => per-tap weight = space*color / (sw_sum + 1e-8*c_sum).
        denom = sw_sum + 1e-8 * c_sum
        inv_norm = pl.reciprocal(denom, approx=True)     # EUP vrcp (cheap slot)
        inv_norm = inv_norm * (2.0 - denom * inv_norm)   # one NR step -> ~f32 exact
        o_ref[0] = (acc * inv_norm[None, :, :]).astype(o_ref.dtype)

    return pl.pallas_call(
        kernel,
        out_shape=jax.ShapeDtypeStruct((Bg, C, H, W), jnp.float32),
        grid=(Bg,),
        in_specs=[
            pl.BlockSpec(memory_space=pltpu.MemorySpace.SMEM),   # per-batch scalars
            pl.BlockSpec((1, C, H, W), lambda b: (b, 0, 0, 0)),  # images
        ],
        out_specs=pl.BlockSpec((1, C, H, W), lambda b: (b, 0, 0, 0)),
        scratch_shapes=[pltpu.VMEM((C, Hp, Wp), jnp.float32)],
        compiler_params=pltpu.CompilerParams(
            dimension_semantics=("parallel",)),
    )


def _run_group(xg, sigma1_g, inv2s2_g, k):
    """Run one kernel-size group: build per-batch scalar table and call Pallas."""
    Bg, C, H, W = xg.shape
    k = int(k)
    kk = k * k
    # Per-batch normalized spatial gaussian (tiny, computed on device).
    coords = (jnp.arange(k) - k // 2).astype(jnp.float32)
    g2 = coords[None, :] ** 2 + coords[:, None] ** 2                    # (k, k)
    sp = jnp.exp(-g2[None, :, :] / (2.0 * sigma1_g * sigma1_g)[:, None, None])
    sp = sp / jnp.sum(sp, axis=(1, 2), keepdims=True)                   # (Bg, k, k)
    scal = jnp.concatenate(
        [sp.reshape(Bg, kk), inv2s2_g[:, None]], axis=1).astype(jnp.float32)
    return _build_filter(C, H, W, k, int(Bg))(scal, xg)


def bilateral_filter(x, params):
    """Forward pass of BilateralFilter.

    x:      (B, C, H, W) float32
    params: (B, 3) — [kernel_size_logit, sigma_space_logit, sigma_color_logit]
    returns (B, C, H, W) float32
    """
    x = jnp.asarray(x, jnp.float32)
    params = jnp.asarray(params, jnp.float32)
    B, C, H, W = x.shape

    # Per-batch sigmas: computed on device, fed to the kernel as SMEM scalars
    # (no host sync, no recompilation per sigma value).
    sigma1 = 3.5 + 5.5 * jax.nn.sigmoid(params[:, 1])                   # (B,)
    sigma2 = 5.5 + 7.5 * jax.nn.sigmoid(params[:, 2])                   # (B,)
    inv2s2 = 1.0 / (2.0 * sigma2 * sigma2)                              # (B,)

    # Kernel size selection mirrors params[:,0].long().item() in the reference:
    # it is data-dependent control flow, so one small host read is inherent.
    p0 = np.asarray(params[:, 0])
    k_long = np.trunc(p0).astype(np.int64)                              # like .long()
    with np.errstate(over="ignore"):
        k_f = 1.0 + 2.0 / (1.0 + np.exp(-k_long.astype(np.float64)))
    k_sizes = 2 * k_f.astype(np.int64) + 1                              # 3 or 5

    groups = {}
    for i in range(B):
        groups.setdefault(int(k_sizes[i]), []).append(i)

    if len(groups) == 1:
        ((k, _),) = groups.items()
        return _run_group(x, sigma1, inv2s2, k)

    out = jnp.zeros((B, C, H, W), jnp.float32)
    for k, idx in groups.items():
        idx_a = jnp.asarray(idx, dtype=jnp.int32)
        og = _run_group(x[idx_a], sigma1[idx_a], inv2s2[idx_a], k)
        out = out.at[idx_a].set(og)
    return out


if __name__ == "__main__":
    key = jax.random.PRNGKey(0)
    kx, kp = jax.random.split(key)
    B, C, H, W = 2, 4, 16, 16
    x = jax.random.normal(kx, (B, C, H, W), dtype=jnp.float32)
    params = jax.random.normal(kp, (B, 3), dtype=jnp.float32) * 2.0

    out = bilateral_filter(x, params)
    out = jax.block_until_ready(out)
    assert out.shape == (B, C, H, W)
    assert bool(jnp.all(jnp.isfinite(out)))
    print("KERNEL_OK")
</pallas_src>

<mosaic_0001>
module attributes {stable_mosaic.version = 11 : i64} {
  func.func @kernel(%arg0: i32, %arg1: memref<1x10xf32, #tpu.memory_space<smem>>, %arg2: memref<1x4x16x16xf32, #tpu.memory_space<vmem>>, %arg3: memref<1x4x16x16xf32, #tpu.memory_space<vmem>>, %arg4: memref<4x18x18xf32, #tpu.memory_space<vmem>>) attributes {dimension_semantics = [#tpu.dimension_semantics<parallel>], iteration_bounds = array<i64: 1>, scalar_prefetch = 0 : i64, scratch_operands = 1 : i64, tpu.core_type = #tpu.core_type<tc>, window_params = [{transform_indices = @transform_0, window_bounds = array<i64: 1, 10>}, {transform_indices = @transform_1, window_bounds = array<i64: 1, 4, 16, 16>}, {transform_indices = @transform_2, window_bounds = array<i64: 1, 4, 16, 16>}]} {
    %0 = arith.index_cast %arg0 : i32 to index
    %c9 = arith.constant 9 : index
    %1 = memref.load %arg1[%0, %c9] : memref<1x10xf32, #tpu.memory_space<smem>>
    %cst = arith.constant 0.000000e+00 : f32
    %2 = vector.broadcast %cst : f32 to vector<4x18x18xf32>
    %c0 = arith.constant 0 : index
    %c0_0 = arith.constant 0 : index
    %c0_1 = arith.constant 0 : index
    %3 = vector.load %arg4[%c0, %c0_0, %c0_1] : memref<4x18x18xf32, #tpu.memory_space<vmem>>, vector<4x18x18xf32>
    tpu.vector_store %arg4[%c0, %c0_0, %c0_1], %2 {strides = array<i32>} : memref<4x18x18xf32, #tpu.memory_space<vmem>>, vector<4x18x18xf32>,
    %c0_2 = arith.constant 0 : index
    %c0_3 = arith.constant 0 : index
    %c0_4 = arith.constant 0 : index
    %c0_5 = arith.constant 0 : index
    %4 = vector.load %arg2[%c0_2, %c0_3, %c0_4, %c0_5] : memref<1x4x16x16xf32, #tpu.memory_space<vmem>>, vector<1x4x16x16xf32>
    %5 = vector.shape_cast %4 : vector<1x4x16x16xf32> to vector<4x16x16xf32>
    %c0_6 = arith.constant 0 : index
    %c1 = arith.constant 1 : index
    %c1_7 = arith.constant 1 : index
    %6 = vector.load %arg4[%c0_6, %c1, %c1_7] : memref<4x18x18xf32, #tpu.memory_space<vmem>>, vector<4x16x16xf32>
    tpu.vector_store %arg4[%c0_6, %c1, %c1_7], %5 {strides = array<i32>} : memref<4x18x18xf32, #tpu.memory_space<vmem>>, vector<4x16x16xf32>,
    %c0_8 = arith.constant 0 : index
    %c0_9 = arith.constant 0 : index
    %c0_10 = arith.constant 0 : index
    %7 = vector.load %arg4[%c0_8, %c0_9, %c0_10] : memref<4x18x18xf32, #tpu.memory_space<vmem>>, vector<4x18x18xf32>
    %cst_11 = arith.constant dense<0.000000e+00> : vector<18x18xf32>
    %8 = vector.multi_reduction <add>, %7, %cst_11 [0] : vector<4x18x18xf32> to vector<18x18xf32>
    %cst_12 = arith.constant 4.000000e+00 : f32
    %9 = vector.broadcast %cst_12 : f32 to vector<18x18xf32>
    %10 = arith.divf %8, %9 : vector<18x18xf32>
    %11 = vector.extract_strided_slice %10 {offsets = [1, 1], sizes = [16, 16], strides = [1, 1]} : vector<18x18xf32> to vector<16x16xf32>
    %cst_13 = arith.constant 0.000000e+00 : f32
    %12 = vector.broadcast %cst_13 : f32 to vector<16x16xf32>
    %cst_14 = arith.constant 0.000000e+00 : f32
    %13 = vector.broadcast %cst_14 : f32 to vector<16x16xf32>
    %cst_15 = arith.constant 0.000000e+00 : f32
    %14 = vector.broadcast %cst_15 : f32 to vector<4x16x16xf32>
    %15 = vector.extract_strided_slice %10 {offsets = [0, 0], sizes = [16, 18], strides = [1, 1]} : vector<18x18xf32> to vector<16x18xf32>
    %16 = vector.extract_strided_slice %7 {offsets = [0, 0, 0], sizes = [4, 16, 18], strides = [1, 1, 1]} : vector<4x18x18xf32> to vector<4x16x18xf32>
    %17 = vector.extract_strided_slice %15 {offsets = [0, 0], sizes = [16, 16], strides = [1, 1]} : vector<16x18xf32> to vector<16x16xf32>
    %18 = arith.subf %17, %11 : vector<16x16xf32>
    %19 = arith.mulf %18, %18 : vector<16x16xf32>
    %cst_16 = arith.constant 0.000000e+00 : f32
    %20 = vector.broadcast %cst_16 : f32 to vector<16x16xf32>
    %21 = arith.subf %20, %19 : vector<16x16xf32>
    %22 = vector.broadcast %1 : f32 to vector<16x16xf32>
    %23 = arith.mulf %21, %22 : vector<16x16xf32>
    %24 = math.exp %23 : vector<16x16xf32>
    %25 = arith.index_cast %arg0 : i32 to index
    %c0_17 = arith.constant 0 : index
    %26 = memref.load %arg1[%25, %c0_17] : memref<1x10xf32, #tpu.memory_space<smem>>
    %27 = vector.broadcast %26 : f32 to vector<16x16xf32>
    %28 = arith.mulf %27, %24 : vector<16x16xf32>
    %29 = arith.addf %12, %28 : vector<16x16xf32>
    %30 = arith.addf %13, %24 : vector<16x16xf32>
    %31 = vector.extract_strided_slice %16 {offsets = [0, 0, 0], sizes = [4, 16, 16], strides = [1, 1, 1]} : vector<4x16x18xf32> to vector<4x16x16xf32>
    %32 = vector.shape_cast %28 : vector<16x16xf32> to vector<1x16x16xf32>
    %33 = vector.broadcast %32 : vector<1x16x16xf32> to vector<4x16x16xf32>
    %34 = arith.mulf %31, %33 : vector<4x16x16xf32>
    %35 = arith.addf %14, %34 : vector<4x16x16xf32>
    %36 = vector.extract_strided_slice %15 {offsets = [0, 1], sizes = [16, 16], strides = [1, 1]} : vector<16x18xf32> to vector<16x16xf32>
    %37 = arith.subf %36, %11 : vector<16x16xf32>
    %38 = arith.mulf %37, %37 : vector<16x16xf32>
    %cst_18 = arith.constant 0.000000e+00 : f32
    %39 = vector.broadcast %cst_18 : f32 to vector<16x16xf32>
    %40 = arith.subf %39, %38 : vector<16x16xf32>
    %41 = vector.broadcast %1 : f32 to vector<16x16xf32>
    %42 = arith.mulf %40, %41 : vector<16x16xf32>
    %43 = math.exp %42 : vector<16x16xf32>
    %44 = arith.index_cast %arg0 : i32 to index
    %c1_19 = arith.constant 1 : index
    %45 = memref.load %arg1[%44, %c1_19] : memref<1x10xf32, #tpu.memory_space<smem>>
    %46 = vector.broadcast %45 : f32 to vector<16x16xf32>
    %47 = arith.mulf %46, %43 : vector<16x16xf32>
    %48 = arith.addf %29, %47 : vector<16x16xf32>
    %49 = arith.addf %30, %43 : vector<16x16xf32>
    %50 = vector.extract_strided_slice %16 {offsets = [0, 0, 1], sizes = [4, 16, 16], strides = [1, 1, 1]} : vector<4x16x18xf32> to vector<4x16x16xf32>
    %51 = vector.shape_cast %47 : vector<16x16xf32> to vector<1x16x16xf32>
    %52 = vector.broadcast %51 : vector<1x16x16xf32> to vector<4x16x16xf32>
    %53 = arith.mulf %50, %52 : vector<4x16x16xf32>
    %54 = arith.addf %35, %53 : vector<4x16x16xf32>
    %55 = vector.extract_strided_slice %15 {offsets = [0, 2], sizes = [16, 16], strides = [1, 1]} : vector<16x18xf32> to vector<16x16xf32>
    %56 = arith.subf %55, %11 : vector<16x16xf32>
    %57 = arith.mulf %56, %56 : vector<16x16xf32>
    %cst_20 = arith.constant 0.000000e+00 : f32
    %58 = vector.broadcast %cst_20 : f32 to vector<16x16xf32>
    %59 = arith.subf %58, %57 : vector<16x16xf32>
    %60 = vector.broadcast %1 : f32 to vector<16x16xf32>
    %61 = arith.mulf %59, %60 : vector<16x16xf32>
    %62 = math.exp %61 : vector<16x16xf32>
    %63 = arith.index_cast %arg0 : i32 to index
    %c2 = arith.constant 2 : index
    %64 = memref.load %arg1[%63, %c2] : memref<1x10xf32, #tpu.memory_space<smem>>
    %65 = vector.broadcast %64 : f32 to vector<16x16xf32>
    %66 = arith.mulf %65, %62 : vector<16x16xf32>
    %67 = arith.addf %48, %66 : vector<16x16xf32>
    %68 = arith.addf %49, %62 : vector<16x16xf32>
    %69 = vector.extract_strided_slice %16 {offsets = [0, 0, 2], sizes = [4, 16, 16], strides = [1, 1, 1]} : vector<4x16x18xf32> to vector<4x16x16xf32>
    %70 = vector.shape_cast %66 : vector<16x16xf32> to vector<1x16x16xf32>
    %71 = vector.broadcast %70 : vector<1x16x16xf32> to vector<4x16x16xf32>
    %72 = arith.mulf %69, %71 : vector<4x16x16xf32>
    %73 = arith.addf %54, %72 : vector<4x16x16xf32>
    %74 = vector.extract_strided_slice %10 {offsets = [1, 0], sizes = [16, 18], strides = [1, 1]} : vector<18x18xf32> to vector<16x18xf32>
    %75 = vector.extract_strided_slice %7 {offsets = [0, 1, 0], sizes = [4, 16, 18], strides = [1, 1, 1]} : vector<4x18x18xf32> to vector<4x16x18xf32>
    %76 = vector.extract_strided_slice %74 {offsets = [0, 0], sizes = [16, 16], strides = [1, 1]} : vector<16x18xf32> to vector<16x16xf32>
    %77 = arith.subf %76, %11 : vector<16x16xf32>
    %78 = arith.mulf %77, %77 : vector<16x16xf32>
    %cst_21 = arith.constant 0.000000e+00 : f32
    %79 = vector.broadcast %cst_21 : f32 to vector<16x16xf32>
    %80 = arith.subf %79, %78 : vector<16x16xf32>
    %81 = vector.broadcast %1 : f32 to vector<16x16xf32>
    %82 = arith.mulf %80, %81 : vector<16x16xf32>
    %83 = math.exp %82 : vector<16x16xf32>
    %84 = arith.index_cast %arg0 : i32 to index
    %c3 = arith.constant 3 : index
    %85 = memref.load %arg1[%84, %c3] : memref<1x10xf32, #tpu.memory_space<smem>>
    %86 = vector.broadcast %85 : f32 to vector<16x16xf32>
    %87 = arith.mulf %86, %83 : vector<16x16xf32>
    %88 = arith.addf %67, %87 : vector<16x16xf32>
    %89 = arith.addf %68, %83 : vector<16x16xf32>
    %90 = vector.extract_strided_slice %75 {offsets = [0, 0, 0], sizes = [4, 16, 16], strides = [1, 1, 1]} : vector<4x16x18xf32> to vector<4x16x16xf32>
    %91 = vector.shape_cast %87 : vector<16x16xf32> to vector<1x16x16xf32>
    %92 = vector.broadcast %91 : vector<1x16x16xf32> to vector<4x16x16xf32>
    %93 = arith.mulf %90, %92 : vector<4x16x16xf32>
    %94 = arith.addf %73, %93 : vector<4x16x16xf32>
    %cst_22 = arith.constant 1.000000e+00 : f32
    %95 = vector.broadcast %cst_22 : f32 to vector<16x16xf32>
    %96 = arith.index_cast %arg0 : i32 to index
    %c4 = arith.constant 4 : index
    %97 = memref.load %arg1[%96, %c4] : memref<1x10xf32, #tpu.memory_space<smem>>
    %98 = vector.broadcast %97 : f32 to vector<16x16xf32>
    %99 = arith.mulf %98, %95 : vector<16x16xf32>
    %100 = arith.addf %88, %99 : vector<16x16xf32>
    %101 = arith.addf %89, %95 : vector<16x16xf32>
    %102 = vector.extract_strided_slice %75 {offsets = [0, 0, 1], sizes = [4, 16, 16], strides = [1, 1, 1]} : vector<4x16x18xf32> to vector<4x16x16xf32>
    %103 = vector.shape_cast %99 : vector<16x16xf32> to vector<1x16x16xf32>
    %104 = vector.broadcast %103 : vector<1x16x16xf32> to vector<4x16x16xf32>
    %105 = arith.mulf %102, %104 : vector<4x16x16xf32>
    %106 = arith.addf %94, %105 : vector<4x16x16xf32>
    %107 = vector.extract_strided_slice %74 {offsets = [0, 2], sizes = [16, 16], strides = [1, 1]} : vector<16x18xf32> to vector<16x16xf32>
    %108 = arith.subf %107, %11 : vector<16x16xf32>
    %109 = arith.mulf %108, %108 : vector<16x16xf32>
    %cst_23 = arith.constant 0.000000e+00 : f32
    %110 = vector.broadcast %cst_23 : f32 to vector<16x16xf32>
    %111 = arith.subf %110, %109 : vector<16x16xf32>
    %112 = vector.broadcast %1 : f32 to vector<16x16xf32>
    %113 = arith.mulf %111, %112 : vector<16x16xf32>
    %114 = math.exp %113 : vector<16x16xf32>
    %115 = arith.index_cast %arg0 : i32 to index
    %c5 = arith.constant 5 : index
    %116 = memref.load %arg1[%115, %c5] : memref<1x10xf32, #tpu.memory_space<smem>>
    %117 = vector.broadcast %116 : f32 to vector<16x16xf32>
    %118 = arith.mulf %117, %114 : vector<16x16xf32>
    %119 = arith.addf %100, %118 : vector<16x16xf32>
    %120 = arith.addf %101, %114 : vector<16x16xf32>
    %121 = vector.extract_strided_slice %75 {offsets = [0, 0, 2], sizes = [4, 16, 16], strides = [1, 1, 1]} : vector<4x16x18xf32> to vector<4x16x16xf32>
    %122 = vector.shape_cast %118 : vector<16x16xf32> to vector<1x16x16xf32>
    %123 = vector.broadcast %122 : vector<1x16x16xf32> to vector<4x16x16xf32>
    %124 = arith.mulf %121, %123 : vector<4x16x16xf32>
    %125 = arith.addf %106, %124 : vector<4x16x16xf32>
    %126 = vector.extract_strided_slice %10 {offsets = [2, 0], sizes = [16, 18], strides = [1, 1]} : vector<18x18xf32> to vector<16x18xf32>
    %127 = vector.extract_strided_slice %7 {offsets = [0, 2, 0], sizes = [4, 16, 18], strides = [1, 1, 1]} : vector<4x18x18xf32> to vector<4x16x18xf32>
    %128 = vector.extract_strided_slice %126 {offsets = [0, 0], sizes = [16, 16], strides = [1, 1]} : vector<16x18xf32> to vector<16x16xf32>
    %129 = arith.subf %128, %11 : vector<16x16xf32>
    %130 = arith.mulf %129, %129 : vector<16x16xf32>
    %cst_24 = arith.constant 0.000000e+00 : f32
    %131 = vector.broadcast %cst_24 : f32 to vector<16x16xf32>
    %132 = arith.subf %131, %130 : vector<16x16xf32>
    %133 = vector.broadcast %1 : f32 to vector<16x16xf32>
    %134 = arith.mulf %132, %133 : vector<16x16xf32>
    %135 = math.exp %134 : vector<16x16xf32>
    %136 = arith.index_cast %arg0 : i32 to index
    %c6 = arith.constant 6 : index
    %137 = memref.load %arg1[%136, %c6] : memref<1x10xf32, #tpu.memory_space<smem>>
    %138 = vector.broadcast %137 : f32 to vector<16x16xf32>
    %139 = arith.mulf %138, %135 : vector<16x16xf32>
    %140 = arith.addf %119, %139 : vector<16x16xf32>
    %141 = arith.addf %120, %135 : vector<16x16xf32>
    %142 = vector.extract_strided_slice %127 {offsets = [0, 0, 0], sizes = [4, 16, 16], strides = [1, 1, 1]} : vector<4x16x18xf32> to vector<4x16x16xf32>
    %143 = vector.shape_cast %139 : vector<16x16xf32> to vector<1x16x16xf32>
    %144 = vector.broadcast %143 : vector<1x16x16xf32> to vector<4x16x16xf32>
    %145 = arith.mulf %142, %144 : vector<4x16x16xf32>
    %146 = arith.addf %125, %145 : vector<4x16x16xf32>
    %147 = vector.extract_strided_slice %126 {offsets = [0, 1], sizes = [16, 16], strides = [1, 1]} : vector<16x18xf32> to vector<16x16xf32>
    %148 = arith.subf %147, %11 : vector<16x16xf32>
    %149 = arith.mulf %148, %148 : vector<16x16xf32>
    %cst_25 = arith.constant 0.000000e+00 : f32
    %150 = vector.broadcast %cst_25 : f32 to vector<16x16xf32>
    %151 = arith.subf %150, %149 : vector<16x16xf32>
    %152 = vector.broadcast %1 : f32 to vector<16x16xf32>
    %153 = arith.mulf %151, %152 : vector<16x16xf32>
    %154 = math.exp %153 : vector<16x16xf32>
    %155 = arith.index_cast %arg0 : i32 to index
    %c7 = arith.constant 7 : index
    %156 = memref.load %arg1[%155, %c7] : memref<1x10xf32, #tpu.memory_space<smem>>
    %157 = vector.broadcast %156 : f32 to vector<16x16xf32>
    %158 = arith.mulf %157, %154 : vector<16x16xf32>
    %159 = arith.addf %140, %158 : vector<16x16xf32>
    %160 = arith.addf %141, %154 : vector<16x16xf32>
    %161 = vector.extract_strided_slice %127 {offsets = [0, 0, 1], sizes = [4, 16, 16], strides = [1, 1, 1]} : vector<4x16x18xf32> to vector<4x16x16xf32>
    %162 = vector.shape_cast %158 : vector<16x16xf32> to vector<1x16x16xf32>
    %163 = vector.broadcast %162 : vector<1x16x16xf32> to vector<4x16x16xf32>
    %164 = arith.mulf %161, %163 : vector<4x16x16xf32>
    %165 = arith.addf %146, %164 : vector<4x16x16xf32>
    %166 = vector.extract_strided_slice %126 {offsets = [0, 2], sizes = [16, 16], strides = [1, 1]} : vector<16x18xf32> to vector<16x16xf32>
    %167 = arith.subf %166, %11 : vector<16x16xf32>
    %168 = arith.mulf %167, %167 : vector<16x16xf32>
    %cst_26 = arith.constant 0.000000e+00 : f32
    %169 = vector.broadcast %cst_26 : f32 to vector<16x16xf32>
    %170 = arith.subf %169, %168 : vector<16x16xf32>
    %171 = vector.broadcast %1 : f32 to vector<16x16xf32>
    %172 = arith.mulf %170, %171 : vector<16x16xf32>
    %173 = math.exp %172 : vector<16x16xf32>
    %174 = arith.index_cast %arg0 : i32 to index
    %c8 = arith.constant 8 : index
    %175 = memref.load %arg1[%174, %c8] : memref<1x10xf32, #tpu.memory_space<smem>>
    %176 = vector.broadcast %175 : f32 to vector<16x16xf32>
    %177 = arith.mulf %176, %173 : vector<16x16xf32>
    %178 = arith.addf %159, %177 : vector<16x16xf32>
    %179 = arith.addf %160, %173 : vector<16x16xf32>
    %180 = vector.extract_strided_slice %127 {offsets = [0, 0, 2], sizes = [4, 16, 16], strides = [1, 1, 1]} : vector<4x16x18xf32> to vector<4x16x16xf32>
    %181 = vector.shape_cast %177 : vector<16x16xf32> to vector<1x16x16xf32>
    %182 = vector.broadcast %181 : vector<1x16x16xf32> to vector<4x16x16xf32>
    %183 = arith.mulf %180, %182 : vector<4x16x16xf32>
    %184 = arith.addf %165, %183 : vector<4x16x16xf32>
    %cst_27 = arith.constant 9.99999993E-9 : f32
    %185 = vector.broadcast %cst_27 : f32 to vector<16x16xf32>
    %186 = arith.mulf %185, %179 : vector<16x16xf32>
    %187 = arith.addf %178, %186 : vector<16x16xf32>
    %188 = tpu.reciprocal %187 {approx = true} : vector<16x16xf32> -> vector<16x16xf32>
    %189 = arith.mulf %187, %188 : vector<16x16xf32>
    %cst_28 = arith.constant 2.000000e+00 : f32
    %190 = vector.broadcast %cst_28 : f32 to vector<16x16xf32>
    %191 = arith.subf %190, %189 : vector<16x16xf32>
    %192 = arith.mulf %188, %191 : vector<16x16xf32>
    %193 = vector.shape_cast %192 : vector<16x16xf32> to vector<1x16x16xf32>
    %194 = vector.broadcast %193 : vector<1x16x16xf32> to vector<4x16x16xf32>
    %195 = arith.mulf %184, %194 : vector<4x16x16xf32>
    %c0_29 = arith.constant 0 : index
    %c0_30 = arith.constant 0 : index
    %c0_31 = arith.constant 0 : index
    %c0_32 = arith.constant 0 : index
    %196 = vector.load %arg3[%c0_29, %c0_30, %c0_31, %c0_32] : memref<1x4x16x16xf32, #tpu.memory_space<vmem>>, vector<1x4x16x16xf32>
    %197 = vector.shape_cast %196 : vector<1x4x16x16xf32> to vector<4x16x16xf32>
    %198 = vector.shape_cast %195 : vector<4x16x16xf32> to vector<1x4x16x16xf32>
    tpu.vector_store %arg3[%c0_29, %c0_30, %c0_31, %c0_32], %198 {strides = array<i32>} : memref<1x4x16x16xf32, #tpu.memory_space<vmem>>, vector<1x4x16x16xf32>,
    return
  }
  func.func @transform_0(%arg0: i32) -> (i32, i32) {
    %c0_i32 = arith.constant 0 : i32
    %c0_i32_0 = arith.constant 0 : i32
    %c0_i32_1 = arith.constant 0 : i32
    return %c0_i32, %c0_i32_0 : i32, i32
  }
  func.func @transform_1(%arg0: i32) -> (i32, i32, i32, i32) {
    %c0_i32 = arith.constant 0 : i32
    %c0_i32_0 = arith.constant 0 : i32
    %c0_i32_1 = arith.constant 0 : i32
    %c0_i32_2 = arith.constant 0 : i32
    return %arg0, %c0_i32, %c0_i32_0, %c0_i32_1 : i32, i32, i32, i32
  }
  func.func @transform_2(%arg0: i32) -> (i32, i32, i32, i32) {
    %c0_i32 = arith.constant 0 : i32
    %c0_i32_0 = arith.constant 0 : i32
    %c0_i32_1 = arith.constant 0 : i32
    %c0_i32_2 = arith.constant 0 : i32
    return %arg0, %c0_i32, %c0_i32_0, %c0_i32_1 : i32, i32, i32, i32
  }
}

</mosaic_0001>

<llo_original>
// kernel: tpu_custom_call.1
$region0: #{tpu_custom_call.1}
  #allocation0 [shape = 'u32[]', space=smem, size = 0x4, offset = 0x4, fixed_abs, tag = 'smem constant byte address 0x4 - core index']
  #allocation1 [shape = 'u32[144,128]{1,0:T(1,128)}', space=vmem, size = 0x12000, scoped, tag = 'internal scratch']
  #allocation2 [shape = 'f32[4,18,18]{2,1,0:T(8,128)}', space=vmem, size = 0xc000, scoped, tag = 'scratch operand']
  %s0 = inlined_call_operand.hbm [shape: f32[1,10], index: 0, kind: input, shape index: {}]
  %s1 = inlined_call_operand.hbm [shape: f32[1,4,16,16], index: 1, kind: input, shape index: {}]
  %s2 = inlined_call_operand.hbm [shape: f32[1,4,16,16], index: 2, kind: output, shape index: {}]
  %s3 = sld [smem:[#allocation0]]
  $region26: #{tpu_custom_call.1} parent=0
    _
  %s5 = ssub.s32 1, %s3
  %s6 = scalar_select 0, %s5, %s3
  $region1: #{tpu_custom_call.1} parent=0
    #allocation3 [shape = 'u8[512]{0}', space=smem, size = 0x200, scoped, tag = 'input window, operand 0, single buffered']
    #allocation4 [shape = 's32[1]{0}', space=sflag, size = 0x4, scoped, tag = 'scoped memory for tpu_custom_call.1']
    #allocation5 [shape = 's32[1]{0}', space=sflag, size = 0x4, scoped, tag = 'scoped memory for tpu_custom_call.1']
    #allocation6 [shape = 's32[1]{0}', space=sflag, size = 0x4, scoped, tag = 'scoped memory for tpu_custom_call.1']
    #allocation7 [shape = 'u8[32768]{0}', space=vmem, size = 0x8000, scoped, tag = 'input window, operand 1, single buffered']
    #allocation8 [shape = 'u8[32768]{0}', space=vmem, size = 0x8000, scoped, tag = 'output window, operand 0, single buffered']
    %7 = vsyncpa [#allocation6], 0
    %8 = vsyncpa [#allocation4], 0
    %9 = vsyncpa [#allocation5], 0
    // Predicated region
    $region2: #{tpu_custom_call.1} parent=1 // pred_check
      _
    $region3: #{tpu_custom_call.1} parent=1 // pred_check_branch
      %11 = sbr.rel (0) target = $region5
    $region4: #{tpu_custom_call.1} parent=1 // pred_region
      %s13 = ssub.s32 16, 16
      %14 = vsyncadd [#allocation6], %s13
      %17 = dma.hbm_to_smem %s0, 16, [#allocation3], [#allocation6]
    $region5: #{tpu_custom_call.1} parent=1 // pred_fallthru
      _
    // Predicated region
    $region6: #{tpu_custom_call.1} parent=1 // pred_check
      _
    $region7: #{tpu_custom_call.1} parent=1 // pred_check_branch
      %19 = sbr.rel (0) target = $region9
    $region8: #{tpu_custom_call.1} parent=1 // pred_region
      %s21 = ssub.s32 1024, 1024
      %22 = vsyncadd [#allocation4], %s21
      %s23 = sshll.u32 [#allocation7], 4
      %s24 = int_to_ptr.vmem [resolvable:$true] %s23
      %29 = dma.hbm_to_vmem [thread:$0]  %s1, 1024, %s24, [#allocation4], 128, 128, 8
    $region9: #{tpu_custom_call.1} parent=1 // pred_fallthru
      _
    // Predicated region
    $region10: #{tpu_custom_call.1} parent=1 // pred_check
      _
    $region11: #{tpu_custom_call.1} parent=1 // pred_check_branch
      %31 = sbr.rel (0) target = $region13
    $region12: #{tpu_custom_call.1} parent=1 // pred_region
      %32 = dma.done [#allocation6], 16
    $region13: #{tpu_custom_call.1} parent=1 // pred_fallthru
      _
    // Predicated region
    $region14: #{tpu_custom_call.1} parent=1 // pred_check
      _
    $region15: #{tpu_custom_call.1} parent=1 // pred_check_branch
      %34 = sbr.rel (0) target = $region17
    $region16: #{tpu_custom_call.1} parent=1 // pred_region
      %35 = dma.done [#allocation4], 1024
    $region17: #{tpu_custom_call.1} parent=1 // pred_fallthru
      _
    %36 = sfence
    %s37 = smul.u32 0, 128
    %s38 = sadd.s32 %s37, 9
    %s39 = sld [smem:[#allocation3 + %s38]]
    %vm40 = vcmask 146432
    %41 = vst.msk [vmem:[#allocation2] sm:$0xff] %vm40, 0.0
    %42 = vst.msk [vmem:[#allocation2 + $0x8] sm:$0xff] %vm40, 0.0
    %vm43 = vcmask 140288
    %44 = vst.msk [vmem:[#allocation2 + $0x10] sm:$0x3] %vm43, 0.0
    %45 = vst.msk [vmem:[#allocation2 + $0x18] sm:$0xff] %vm40, 0.0
    %46 = vst.msk [vmem:[#allocation2 + $0x20] sm:$0xff] %vm40, 0.0
    %47 = vst.msk [vmem:[#allocation2 + $0x28] sm:$0x3] %vm43, 0.0
    %48 = vst.msk [vmem:[#allocation2 + $0x30] sm:$0xff] %vm40, 0.0
    %49 = vst.msk [vmem:[#allocation2 + $0x38] sm:$0xff] %vm40, 0.0
    %50 = vst.msk [vmem:[#allocation2 + $0x40] sm:$0x3] %vm43, 0.0
    %51 = vst.msk [vmem:[#allocation2 + $0x48] sm:$0xff] %vm40, 0.0
    %52 = vst.msk [vmem:[#allocation2 + $0x50] sm:$0xff] %vm40, 0.0
    %53 = vst.msk [vmem:[#allocation2 + $0x58] sm:$0x3] %vm43, 0.0
    %v54 = vld [vmem:[#allocation7] sm:$0xff]
    %v55 = vld [vmem:[#allocation7 + $0x8] sm:$0xff]
    %v56 = vld [vmem:[#allocation7 + $0x10] sm:$0xff]
    %v57 = vld [vmem:[#allocation7 + $0x18] sm:$0xff]
    %v58 = vld [vmem:[#allocation7 + $0x20] sm:$0xff]
    %v59 = vld [vmem:[#allocation7 + $0x28] sm:$0xff]
    %v60 = vld [vmem:[#allocation7 + $0x30] sm:$0xff]
    %v61 = vld [vmem:[#allocation7 + $0x38] sm:$0xff]
    %70 = vrot.lane.b32.xlu0 %v54, 1
    %v71 = vpop.permute.xlu0 %70
    %72 = vrot.lane.b32.xlu0 %v55, 1
    %v73 = vpop.permute.xlu0 %72
    %74 = vrot.lane.b32.xlu0 %v56, 1
    %v75 = vpop.permute.xlu0 %74
    %76 = vrot.lane.b32.xlu0 %v57, 1
    %v77 = vpop.permute.xlu0 %76
    %78 = vrot.lane.b32.xlu0 %v58, 1
    %v79 = vpop.permute.xlu0 %78
    %80 = vrot.lane.b32.xlu0 %v59, 1
    %v81 = vpop.permute.xlu0 %80
    %82 = vrot.lane.b32.xlu0 %v60, 1
    %v83 = vpop.permute.xlu0 %82
    %84 = vrot.lane.b32.xlu0 %v61, 1
    %v85 = vpop.permute.xlu0 %84
    %vm94 = vcmask 138248
    %95 = vst.msk [vmem:[#allocation2 + $0x1] sm:$0xff] %vm94, %v71
    %96 = vst.msk [vmem:[#allocation2 + $0x9] sm:$0xff] %vm94, %v73
    %97 = vst.msk [vmem:[#allocation2 + $0x19] sm:$0xff] %vm94, %v75
    %98 = vst.msk [vmem:[#allocation2 + $0x21] sm:$0xff] %vm94, %v77
    %99 = vst.msk [vmem:[#allocation2 + $0x31] sm:$0xff] %vm94, %v79
    %100 = vst.msk [vmem:[#allocation2 + $0x39] sm:$0xff] %vm94, %v81
    %101 = vst.msk [vmem:[#allocation2 + $0x49] sm:$0xff] %vm94, %v83
    %102 = vst.msk [vmem:[#allocation2 + $0x51] sm:$0xff] %vm94, %v85
    %v103 = vld [vmem:[#allocation2] sm:$0xff]
    %v104 = vld [vmem:[#allocation2 + $0x8] sm:$0xff]
    %v105 = vld [vmem:[#allocation2 + $0x10] sm:$0x3]
    %v106 = vld [vmem:[#allocation2 + $0x18] sm:$0xff]
    %v107 = vld [vmem:[#allocation2 + $0x20] sm:$0xff]
    %v108 = vld [vmem:[#allocation2 + $0x28] sm:$0x3]
    %v109 = vld [vmem:[#allocation2 + $0x30] sm:$0xff]
    %v110 = vld [vmem:[#allocation2 + $0x38] sm:$0xff]
    %v111 = vld [vmem:[#allocation2 + $0x40] sm:$0x3]
    %v112 = vld [vmem:[#allocation2 + $0x48] sm:$0xff]
    %v113 = vld [vmem:[#allocation2 + $0x50] sm:$0xff]
    %v114 = vld [vmem:[#allocation2 + $0x58] sm:$0x3]
    %v115 = vsel %vm40, %v103, 0.0
    %v116 = vsel %vm40, %v106, 0.0
    %v117 = vadd.f32 %v115, %v116
    %v118 = vsel %vm40, %v109, 0.0
    %v119 = vadd.f32 %v117, %v118
    %v120 = vsel %vm40, %v112, 0.0
    %v121 = vadd.f32 %v119, %v120
    %v122 = vsel %vm40, %v104, 0.0
    %v123 = vsel %vm40, %v107, 0.0
    %v124 = vadd.f32 %v122, %v123
    %v125 = vsel %vm40, %v110, 0.0
    %v126 = vadd.f32 %v124, %v125
    %v127 = vsel %vm40, %v113, 0.0
    %v128 = vadd.f32 %v126, %v127
    %v129 = vsel %vm43, %v105, 0.0
    %v130 = vsel %vm43, %v108, 0.0
    %v131 = vadd.f32 %v129, %v130
    %v132 = vsel %vm43, %v111, 0.0
    %v133 = vadd.f32 %v131, %v132
    %v134 = vsel %vm43, %v114, 0.0
    %v135 = vadd.f32 %v133, %v134
    %v136 = vrcp.pop 4.0
    %v137 = vmul.f32 %v121, %v136
    %v138 = vmul.f32 %v128, %v136
    %v139 = vmul.f32 %v135, %v136
    %vm143 = vcmask 1046528
    %v144 = vrot.slane %v137, 1
    %v145 = vrot.slane %v138, 1
    %v146 = vsel %vm143, %v144, %v145
    %v147 = vrot.slane %v139, 1
    %v148 = vsel %vm143, %v145, %v147
    %149 = vrot.lane.b32.xlu0 %v146, 127
    %v150 = vpop.permute.xlu0 %149
    %151 = vrot.lane.b32.xlu0 %v148, 127
    %v152 = vpop.permute.xlu0 %151
    %v155 = vsub.f32 %v137, %v150
    %v156 = vsub.f32 %v138, %v152
    %v157 = vmul.f32 %v155, %v155
    %v158 = vmul.f32 %v156, %v156
    %v159 = vsub.f32 0.0, %v157
    %v160 = vsub.f32 0.0, %v158
    %v161 = vstv %s39
    %v162 = vmul.f32 %v159, %v161
    %v163 = vmul.f32 %v160, %v161
    %v164 = vmul.f32 %v162, 1.442695
    %v165 = vpow.pop %v164
    %v166 = vmul.f32 %v163, 1.442695
    %v167 = vpow.pop %v166
    %s168 = sld [smem:[#allocation3 + %s37]]
    %v169 = vstv %s168
    %v170 = vmul.f32 %v169, %v165
    %v171 = vmul.f32 %v169, %v167
    %v172 = vadd.f32 %v170, 0.0
    %v173 = vadd.f32 %v171, 0.0
    %v174 = vadd.f32 %v165, 0.0
    %v175 = vadd.f32 %v167, 0.0
    %v176 = vmul.f32 %v103, %v170
    %v177 = vmul.f32 %v104, %v171
    %v178 = vmul.f32 %v106, %v170
    %v179 = vmul.f32 %v107, %v171
    %v180 = vmul.f32 %v109, %v170
    %v181 = vmul.f32 %v110, %v171
    %v182 = vmul.f32 %v112, %v170
    %v183 = vmul.f32 %v113, %v171
    %v184 = vadd.f32 %v176, 0.0
    %v185 = vadd.f32 %v177, 0.0
    %v186 = vadd.f32 %v178, 0.0
    %v187 = vadd.f32 %v179, 0.0
    %v188 = vadd.f32 %v180, 0.0
    %v189 = vadd.f32 %v181, 0.0
    %v190 = vadd.f32 %v182, 0.0
    %v191 = vadd.f32 %v183, 0.0
    %v194 = vsub.f32 %v137, %v146
    %v195 = vsub.f32 %v138, %v148
    %v196 = vmul.f32 %v194, %v194
    %v197 = vmul.f32 %v195, %v195
    %v198 = vsub.f32 0.0, %v196
    %v199 = vsub.f32 0.0, %v197
    %v200 = vmul.f32 %v198, %v161
    %v201 = vmul.f32 %v199, %v161
    %v202 = vmul.f32 %v200, 1.442695
    %v203 = vpow.pop %v202
    %v204 = vmul.f32 %v201, 1.442695
    %v205 = vpow.pop %v204
    %s206 = sadd.s32 %s37, 1
    %s207 = sld [smem:[#allocation3 + %s206]]
    %v208 = vstv %s207
    %v209 = vmul.f32 %v208, %v203
    %v210 = vmul.f32 %v208, %v205
    %213 = vrot.lane.b32.xlu0 %v209, 127
    %v214 = vpop.permute.xlu0 %213
    %215 = vrot.lane.b32.xlu0 %v210, 127
    %v216 = vpop.permute.xlu0 %215
    %v219 = vadd.f32 %v172, %v214
    %v220 = vadd.f32 %v173, %v216
    %223 = vrot.lane.b32.xlu0 %v203, 127
    %v224 = vpop.permute.xlu0 %223
    %225 = vrot.lane.b32.xlu0 %v205, 127
    %v226 = vpop.permute.xlu0 %225
    %v229 = vadd.f32 %v174, %v224
    %v230 = vadd.f32 %v175, %v226
    %v231 = vmul.f32 %v103, %v209
    %v232 = vmul.f32 %v104, %v210
    %v233 = vmul.f32 %v106, %v209
    %v234 = vmul.f32 %v107, %v210
    %v235 = vmul.f32 %v109, %v209
    %v236 = vmul.f32 %v110, %v210
    %v237 = vmul.f32 %v112, %v209
    %v238 = vmul.f32 %v113, %v210
    %247 = vrot.lane.b32.xlu0 %v231, 127
    %v248 = vpop.permute.xlu0 %247
    %249 = vrot.lane.b32.xlu0 %v232, 127
    %v250 = vpop.permute.xlu0 %249
    %251 = vrot.lane.b32.xlu0 %v233, 127
    %v252 = vpop.permute.xlu0 %251
    %253 = vrot.lane.b32.xlu0 %v234, 127
    %v254 = vpop.permute.xlu0 %253
    %255 = vrot.lane.b32.xlu0 %v235, 127
    %v256 = vpop.permute.xlu0 %255
    %257 = vrot.lane.b32.xlu0 %v236, 127
    %v258 = vpop.permute.xlu0 %257
    %259 = vrot.lane.b32.xlu0 %v237, 127
    %v260 = vpop.permute.xlu0 %259
    %261 = vrot.lane.b32.xlu0 %v238, 127
    %v262 = vpop.permute.xlu0 %261
    %v271 = vadd.f32 %v184, %v248
    %v272 = vadd.f32 %v185, %v250
    %v273 = vadd.f32 %v186, %v252
    %v274 = vadd.f32 %v187, %v254
    %v275 = vadd.f32 %v188, %v256
    %v276 = vadd.f32 %v189, %v258
    %v277 = vadd.f32 %v190, %v260
    %v278 = vadd.f32 %v191, %v262
    %279 = vrot.lane.b32.xlu0 %v146, 1
    %v280 = vpop.permute.xlu0 %279
    %281 = vrot.lane.b32.xlu0 %v148, 1
    %v282 = vpop.permute.xlu0 %281
    %v285 = vsub.f32 %v137, %v280
    %v286 = vsub.f32 %v138, %v282
    %v287 = vmul.f32 %v285, %v285
    %v288 = vmul.f32 %v286, %v286
    %v289 = vsub.f32 0.0, %v287
    %v290 = vsub.f32 0.0, %v288
    %v291 = vmul.f32 %v289, %v161
    %v292 = vmul.f32 %v290, %v161
    %v293 = vmul.f32 %v291, 1.442695
    %v294 = vpow.pop %v293
    %v295 = vmul.f32 %v292, 1.442695
    %v296 = vpow.pop %v295
    %s297 = sadd.s32 %s37, 2
    %s298 = sld [smem:[#allocation3 + %s297]]
    %v299 = vstv %s298
    %v300 = vmul.f32 %v299, %v294
    %v301 = vmul.f32 %v299, %v296
    %304 = vrot.lane.b32.xlu0 %v300, 126
    %v305 = vpop.permute.xlu0 %304
    %306 = vrot.lane.b32.xlu0 %v301, 126
    %v307 = vpop.permute.xlu0 %306
    %v310 = vadd.f32 %v219, %v305
    %v311 = vadd.f32 %v220, %v307
    %314 = vrot.lane.b32.xlu0 %v294, 126
    %v315 = vpop.permute.xlu0 %314
    %316 = vrot.lane.b32.xlu0 %v296, 126
    %v317 = vpop.permute.xlu0 %316
    %v320 = vadd.f32 %v229, %v315
    %v321 = vadd.f32 %v230, %v317
    %v322 = vmul.f32 %v103, %v300
    %v323 = vmul.f32 %v104, %v301
    %v324 = vmul.f32 %v106, %v300
    %v325 = vmul.f32 %v107, %v301
    %v326 = vmul.f32 %v109, %v300
    %v327 = vmul.f32 %v110, %v301
    %v328 = vmul.f32 %v112, %v300
    %v329 = vmul.f32 %v113, %v301
    %338 = vrot.lane.b32.xlu0 %v322, 126
    %v339 = vpop.permute.xlu0 %338
    %340 = vrot.lane.b32.xlu0 %v323, 126
    %v341 = vpop.permute.xlu0 %340
    %342 = vrot.lane.b32.xlu0 %v324, 126
    %v343 = vpop.permute.xlu0 %342
    %344 = vrot.lane.b32.xlu0 %v325, 126
    %v345 = vpop.permute.xlu0 %344
    %346 = vrot.lane.b32.xlu0 %v326, 126
    %v347 = vpop.permute.xlu0 %346
    %348 = vrot.lane.b32.xlu0 %v327, 126
    %v349 = vpop.permute.xlu0 %348
    %350 = vrot.lane.b32.xlu0 %v328, 126
    %v351 = vpop.permute.xlu0 %350
    %352 = vrot.lane.b32.xlu0 %v329, 126
    %v353 = vpop.permute.xlu0 %352
    %v362 = vadd.f32 %v271, %v339
    %v363 = vadd.f32 %v272, %v341
    %v364 = vadd.f32 %v273, %v343
    %v365 = vadd.f32 %v274, %v345
    %v366 = vadd.f32 %v275, %v347
    %v367 = vadd.f32 %v276, %v349
    %v368 = vadd.f32 %v277, %v351
    %v369 = vadd.f32 %v278, %v353
    %370 = vrot.lane.b32.xlu0 %v137, 127
    %v371 = vpop.permute.xlu0 %370
    %372 = vrot.lane.b32.xlu0 %v138, 127
    %v373 = vpop.permute.xlu0 %372
    %374 = vrot.lane.b32.xlu0 %v139, 127
    %v375 = vpop.permute.xlu0 %374
    %v379 = vsub.f32 %v137, %v371
    %v380 = vsub.f32 %v138, %v373
    %v381 = vsub.f32 %v139, %v375
    %v382 = vmul.f32 %v379, %v379
    %v383 = vmul.f32 %v380, %v380
    %v384 = vmul.f32 %v381, %v381
    %v385 = vsub.f32 0.0, %v382
    %v386 = vsub.f32 0.0, %v383
    %v387 = vsub.f32 0.0, %v384
    %v388 = vmul.f32 %v385, %v161
    %v389 = vmul.f32 %v386, %v161
    %v390 = vmul.f32 %v387, %v161
    %v391 = vmul.f32 %v388, 1.442695
    %v392 = vpow.pop %v391
    %v393 = vmul.f32 %v389, 1.442695
    %v394 = vpow.pop %v393
    %v395 = vmul.f32 %v390, 1.442695
    %v396 = vpow.pop %v395
    %s397 = sadd.s32 %s37, 3
    %s398 = sld [smem:[#allocation3 + %s397]]
    %v399 = vstv %s398
    %v400 = vmul.f32 %v399, %v392
    %v401 = vmul.f32 %v399, %v394
    %v402 = vmul.f32 %v399, %v396
    %v406 = vrot.slane %v400, 1
    %v407 = vrot.slane %v401, 1
    %v408 = vsel %vm143, %v406, %v407
    %v409 = vrot.slane %v402, 1
    %v410 = vsel %vm143, %v407, %v409
    %v413 = vadd.f32 %v310, %v408
    %v414 = vadd.f32 %v311, %v410
    %v418 = vrot.slane %v392, 1
    %v419 = vrot.slane %v394, 1
    %v420 = vsel %vm143, %v418, %v419
    %v421 = vrot.slane %v396, 1
    %v422 = vsel %vm143, %v419, %v421
    %v425 = vadd.f32 %v320, %v420
    %v426 = vadd.f32 %v321, %v422
    %v427 = vmul.f32 %v103, %v400
    %v428 = vmul.f32 %v104, %v401
    %v429 = vmul.f32 %v105, %v402
    %v430 = vmul.f32 %v106, %v400
    %v431 = vmul.f32 %v107, %v401
    %v432 = vmul.f32 %v108, %v402
    %v433 = vmul.f32 %v109, %v400
    %v434 = vmul.f32 %v110, %v401
    %v435 = vmul.f32 %v111, %v402
    %v436 = vmul.f32 %v112, %v400
    %v437 = vmul.f32 %v113, %v401
    %v438 = vmul.f32 %v114, %v402
    %v451 = vrot.slane %v427, 1
    %v452 = vrot.slane %v428, 1
    %v453 = vsel %vm143, %v451, %v452
    %v454 = vrot.slane %v429, 1
    %v455 = vsel %vm143, %v452, %v454
    %v456 = vrot.slane %v430, 1
    %v457 = vrot.slane %v431, 1
    %v458 = vsel %vm143, %v456, %v457
    %v459 = vrot.slane %v432, 1
    %v460 = vsel %vm143, %v457, %v459
    %v461 = vrot.slane %v433, 1
    %v462 = vrot.slane %v434, 1
    %v463 = vsel %vm143, %v461, %v462
    %v464 = vrot.slane %v435, 1
    %v465 = vsel %vm143, %v462, %v464
    %v466 = vrot.slane %v436, 1
    %v467 = vrot.slane %v437, 1
    %v468 = vsel %vm143, %v466, %v467
    %v469 = vrot.slane %v438, 1
    %v470 = vsel %vm143, %v467, %v469
    %v479 = vadd.f32 %v362, %v453
    %v480 = vadd.f32 %v363, %v455
    %v481 = vadd.f32 %v364, %v458
    %v482 = vadd.f32 %v365, %v460
    %v483 = vadd.f32 %v366, %v463
    %v484 = vadd.f32 %v367, %v465
    %v485 = vadd.f32 %v368, %v468
    %v486 = vadd.f32 %v369, %v470
    %s487 = sadd.s32 %s37, 4
    %s488 = sld [smem:[#allocation3 + %s487]]
    %v489 = vstv %s488
    %v490 = vadd.f32 %v413, %v489
    %v491 = vadd.f32 %v414, %v489
    %v492 = vadd.f32 %v425, 1.0
    %v493 = vadd.f32 %v426, 1.0
    %v494 = vmul.f32 %v103, %v489
    %v495 = vmul.f32 %v104, %v489
    %v496 = vmul.f32 %v105, %v489
    %v497 = vmul.f32 %v106, %v489
    %v498 = vmul.f32 %v107, %v489
    %v499 = vmul.f32 %v108, %v489
    %v500 = vmul.f32 %v109, %v489
    %v501 = vmul.f32 %v110, %v489
    %v502 = vmul.f32 %v111, %v489
    %v503 = vmul.f32 %v112, %v489
    %v504 = vmul.f32 %v113, %v489
    %v505 = vmul.f32 %v114, %v489
    %v518 = vrot.slane %v494, 1
    %v519 = vrot.slane %v495, 1
    %v520 = vsel %vm143, %v518, %v519
    %v521 = vrot.slane %v496, 1
    %v522 = vsel %vm143, %v519, %v521
    %v523 = vrot.slane %v497, 1
    %v524 = vrot.slane %v498, 1
    %v525 = vsel %vm143, %v523, %v524
    %v526 = vrot.slane %v499, 1
    %v527 = vsel %vm143, %v524, %v526
    %v528 = vrot.slane %v500, 1
    %v529 = vrot.slane %v501, 1
    %v530 = vsel %vm143, %v528, %v529
    %v531 = vrot.slane %v502, 1
    %v532 = vsel %vm143, %v529, %v531
    %v533 = vrot.slane %v503, 1
    %v534 = vrot.slane %v504, 1
    %v535 = vsel %vm143, %v533, %v534
    %v536 = vrot.slane %v505, 1
    %v537 = vsel %vm143, %v534, %v536
    %538 = vrot.lane.b32.xlu0 %v520, 127
    %v539 = vpop.permute.xlu0 %538
    %540 = vrot.lane.b32.xlu0 %v522, 127
    %v541 = vpop.permute.xlu0 %540
    %542 = vrot.lane.b32.xlu0 %v525, 127
    %v543 = vpop.permute.xlu0 %542
    %544 = vrot.lane.b32.xlu0 %v527, 127
    %v545 = vpop.permute.xlu0 %544
    %546 = vrot.lane.b32.xlu0 %v530, 127
    %v547 = vpop.permute.xlu0 %546
    %548 = vrot.lane.b32.xlu0 %v532, 127
    %v549 = vpop.permute.xlu0 %548
    %550 = vrot.lane.b32.xlu0 %v535, 127
    %v551 = vpop.permute.xlu0 %550
    %552 = vrot.lane.b32.xlu0 %v537, 127
    %v553 = vpop.permute.xlu0 %552
    %v562 = vadd.f32 %v479, %v539
    %v563 = vadd.f32 %v480, %v541
    %v564 = vadd.f32 %v481, %v543
    %v565 = vadd.f32 %v482, %v545
    %v566 = vadd.f32 %v483, %v547
    %v567 = vadd.f32 %v484, %v549
    %v568 = vadd.f32 %v485, %v551
    %v569 = vadd.f32 %v486, %v553
    %570 = vrot.lane.b32.xlu0 %v137, 1
    %v571 = vpop.permute.xlu0 %570
    %572 = vrot.lane.b32.xlu0 %v138, 1
    %v573 = vpop.permute.xlu0 %572
    %574 = vrot.lane.b32.xlu0 %v139, 1
    %v575 = vpop.permute.xlu0 %574
    %v579 = vsub.f32 %v137, %v571
    %v580 = vsub.f32 %v138, %v573
    %v581 = vsub.f32 %v139, %v575
    %v582 = vmul.f32 %v579, %v579
    %v583 = vmul.f32 %v580, %v580
    %v584 = vmul.f32 %v581, %v581
    %v585 = vsub.f32 0.0, %v582
    %v586 = vsub.f32 0.0, %v583
    %v587 = vsub.f32 0.0, %v584
    %v588 = vmul.f32 %v585, %v161
    %v589 = vmul.f32 %v586, %v161
    %v590 = vmul.f32 %v587, %v161
    %v591 = vmul.f32 %v588, 1.442695
    %v592 = vpow.pop %v591
    %v593 = vmul.f32 %v589, 1.442695
    %v594 = vpow.pop %v593
    %v595 = vmul.f32 %v590, 1.442695
    %v596 = vpow.pop %v595
    %s597 = sadd.s32 %s37, 5
    %s598 = sld [smem:[#allocation3 + %s597]]
    %v599 = vstv %s598
    %v600 = vmul.f32 %v599, %v592
    %v601 = vmul.f32 %v599, %v594
    %v602 = vmul.f32 %v599, %v596
    %v606 = vrot.slane %v600, 1
    %v607 = vrot.slane %v601, 1
    %v608 = vsel %vm143, %v606, %v607
    %v609 = vrot.slane %v602, 1
    %v610 = vsel %vm143, %v607, %v609
    %611 = vrot.lane.b32.xlu0 %v608, 126
    %v612 = vpop.permute.xlu0 %611
    %613 = vrot.lane.b32.xlu0 %v610, 126
    %v614 = vpop.permute.xlu0 %613
    %v617 = vadd.f32 %v490, %v612
    %v618 = vadd.f32 %v491, %v614
    %v622 = vrot.slane %v592, 1
    %v623 = vrot.slane %v594, 1
    %v624 = vsel %vm143, %v622, %v623
    %v625 = vrot.slane %v596, 1
    %v626 = vsel %vm143, %v623, %v625
    %627 = vrot.lane.b32.xlu0 %v624, 126
    %v628 = vpop.permute.xlu0 %627
    %629 = vrot.lane.b32.xlu0 %v626, 126
    %v630 = vpop.permute.xlu0 %629
    %v633 = vadd.f32 %v492, %v628
    %v634 = vadd.f32 %v493, %v630
    %v635 = vmul.f32 %v103, %v600
    %v636 = vmul.f32 %v104, %v601
    %v637 = vmul.f32 %v105, %v602
    %v638 = vmul.f32 %v106, %v600
    %v639 = vmul.f32 %v107, %v601
    %v640 = vmul.f32 %v108, %v602
    %v641 = vmul.f32 %v109, %v600
    %v642 = vmul.f32 %v110, %v601
    %v643 = vmul.f32 %v111, %v602
    %v644 = vmul.f32 %v112, %v600
    %v645 = vmul.f32 %v113, %v601
    %v646 = vmul.f32 %v114, %v602
    %v659 = vrot.slane %v635, 1
    %v660 = vrot.slane %v636, 1
    %v661 = vsel %vm143, %v659, %v660
    %v662 = vrot.slane %v637, 1
    %v663 = vsel %vm143, %v660, %v662
    %v664 = vrot.slane %v638, 1
    %v665 = vrot.slane %v639, 1
    %v666 = vsel %vm143, %v664, %v665
    %v667 = vrot.slane %v640, 1
    %v668 = vsel %vm143, %v665, %v667
    %v669 = vrot.slane %v641, 1
    %v670 = vrot.slane %v642, 1
    %v671 = vsel %vm143, %v669, %v670
    %v672 = vrot.slane %v643, 1
    %v673 = vsel %vm143, %v670, %v672
    %v674 = vrot.slane %v644, 1
    %v675 = vrot.slane %v645, 1
    %v676 = vsel %vm143, %v674, %v675
    %v677 = vrot.slane %v646, 1
    %v678 = vsel %vm143, %v675, %v677
    %679 = vrot.lane.b32.xlu0 %v661, 126
    %v680 = vpop.permute.xlu0 %679
    %681 = vrot.lane.b32.xlu0 %v663, 126
    %v682 = vpop.permute.xlu0 %681
    %683 = vrot.lane.b32.xlu0 %v666, 126
    %v684 = vpop.permute.xlu0 %683
    %685 = vrot.lane.b32.xlu0 %v668, 126
    %v686 = vpop.permute.xlu0 %685
    %687 = vrot.lane.b32.xlu0 %v671, 126
    %v688 = vpop.permute.xlu0 %687
    %689 = vrot.lane.b32.xlu0 %v673, 126
    %v690 = vpop.permute.xlu0 %689
    %691 = vrot.lane.b32.xlu0 %v676, 126
    %v692 = vpop.permute.xlu0 %691
    %693 = vrot.lane.b32.xlu0 %v678, 126
    %v694 = vpop.permute.xlu0 %693
    %v703 = vadd.f32 %v562, %v680
    %v704 = vadd.f32 %v563, %v682
    %v705 = vadd.f32 %v564, %v684
    %v706 = vadd.f32 %v565, %v686
    %v707 = vadd.f32 %v566, %v688
    %v708 = vadd.f32 %v567, %v690
    %v709 = vadd.f32 %v568, %v692
    %v710 = vadd.f32 %v569, %v694
    %vm711 = vcmask 1040384
    %v712 = vrot.slane %v137, 7
    %v713 = vrot.slane %v138, 7
    %v714 = vsel %vm711, %v712, %v713
    %v715 = vrot.slane %v139, 7
    %v716 = vsel %vm711, %v713, %v715
    %717 = vrot.lane.b32.xlu0 %v712, 127
    %v718 = vpop.permute.xlu0 %717
    %719 = vrot.lane.b32.xlu0 %v714, 127
    %v720 = vpop.permute.xlu0 %719
    %721 = vrot.lane.b32.xlu0 %v716, 127
    %v722 = vpop.permute.xlu0 %721
    %v726 = vsub.f32 %v137, %v718
    %v727 = vsub.f32 %v138, %v720
    %v728 = vsub.f32 %v139, %v722
    %v729 = vmul.f32 %v726, %v726
    %v730 = vmul.f32 %v727, %v727
    %v731 = vmul.f32 %v728, %v728
    %v732 = vsub.f32 0.0, %v729
    %v733 = vsub.f32 0.0, %v730
    %v734 = vsub.f32 0.0, %v731
    %v735 = vmul.f32 %v732, %v161
    %v736 = vmul.f32 %v733, %v161
    %v737 = vmul.f32 %v734, %v161
    %v738 = vmul.f32 %v735, 1.442695
    %v739 = vpow.pop %v738
    %v740 = vmul.f32 %v736, 1.442695
    %v741 = vpow.pop %v740
    %v742 = vmul.f32 %v737, 1.442695
    %v743 = vpow.pop %v742
    %s744 = sadd.s32 %s37, 6
    %s745 = sld [smem:[#allocation3 + %s744]]
    %v746 = vstv %s745
    %v747 = vmul.f32 %v746, %v739
    %v748 = vmul.f32 %v746, %v741
    %v749 = vmul.f32 %v746, %v743
    %vm753 = vcmask 1045504
    %v754 = vrot.slane %v747, 2
    %v755 = vrot.slane %v748, 2
    %v756 = vsel %vm753, %v754, %v755
    %v757 = vrot.slane %v749, 2
    %v758 = vsel %vm753, %v755, %v757
    %v761 = vadd.f32 %v617, %v756
    %v762 = vadd.f32 %v618, %v758
    %v766 = vrot.slane %v739, 2
    %v767 = vrot.slane %v741, 2
    %v768 = vsel %vm753, %v766, %v767
    %v769 = vrot.slane %v743, 2
    %v770 = vsel %vm753, %v767, %v769
    %v773 = vadd.f32 %v633, %v768
    %v774 = vadd.f32 %v634, %v770
    %v775 = vmul.f32 %v103, %v747
    %v776 = vmul.f32 %v104, %v748
    %v777 = vmul.f32 %v105, %v749
    %v778 = vmul.f32 %v106, %v747
    %v779 = vmul.f32 %v107, %v748
    %v780 = vmul.f32 %v108, %v749
    %v781 = vmul.f32 %v109, %v747
    %v782 = vmul.f32 %v110, %v748
    %v783 = vmul.f32 %v111, %v749
    %v784 = vmul.f32 %v112, %v747
    %v785 = vmul.f32 %v113, %v748
    %v786 = vmul.f32 %v114, %v749
    %v799 = vrot.slane %v775, 2
    %v800 = vrot.slane %v776, 2
    %v801 = vsel %vm753, %v799, %v800
    %v802 = vrot.slane %v777, 2
    %v803 = vsel %vm753, %v800, %v802
    %v804 = vrot.slane %v778, 2
    %v805 = vrot.slane %v779, 2
    %v806 = vsel %vm753, %v804, %v805
    %v807 = vrot.slane %v780, 2
    %v808 = vsel %vm753, %v805, %v807
    %v809 = vrot.slane %v781, 2
    %v810 = vrot.slane %v782, 2
    %v811 = vsel %vm753, %v809, %v810
    %v812 = vrot.slane %v783, 2
    %v813 = vsel %vm753, %v810, %v812
    %v814 = vrot.slane %v784, 2
    %v815 = vrot.slane %v785, 2
    %v816 = vsel %vm753, %v814, %v815
    %v817 = vrot.slane %v786, 2
    %v818 = vsel %vm753, %v815, %v817
    %v827 = vadd.f32 %v703, %v801
    %v828 = vadd.f32 %v704, %v803
    %v829 = vadd.f32 %v705, %v806
    %v830 = vadd.f32 %v706, %v808
    %v831 = vadd.f32 %v707, %v811
    %v832 = vadd.f32 %v708, %v813
    %v833 = vadd.f32 %v709, %v816
    %v834 = vadd.f32 %v710, %v818
    %v838 = vsub.f32 %v137, %v712
    %v839 = vsub.f32 %v138, %v714
    %v840 = vsub.f32 %v139, %v716
    %v841 = vmul.f32 %v838, %v838
    %v842 = vmul.f32 %v839, %v839
    %v843 = vmul.f32 %v840, %v840
    %v844 = vsub.f32 0.0, %v841
    %v845 = vsub.f32 0.0, %v842
    %v846 = vsub.f32 0.0, %v843
    %v847 = vmul.f32 %v844, %v161
    %v848 = vmul.f32 %v845, %v161
    %v849 = vmul.f32 %v846, %v161
    %v850 = vmul.f32 %v847, 1.442695
    %v851 = vpow.pop %v850
    %v852 = vmul.f32 %v848, 1.442695
    %v853 = vpow.pop %v852
    %v854 = vmul.f32 %v849, 1.442695
    %v855 = vpow.pop %v854
    %s856 = sadd.s32 %s37, 7
    %s857 = sld [smem:[#allocation3 + %s856]]
    %v858 = vstv %s857
    %v859 = vmul.f32 %v858, %v851
    %v860 = vmul.f32 %v858, %v853
    %v861 = vmul.f32 %v858, %v855
    %v865 = vrot.slane %v859, 2
    %v866 = vrot.slane %v860, 2
    %v867 = vsel %vm753, %v865, %v866
    %v868 = vrot.slane %v861, 2
    %v869 = vsel %vm753, %v866, %v868
    %870 = vrot.lane.b32.xlu0 %v867, 127
    %v871 = vpop.permute.xlu0 %870
    %872 = vrot.lane.b32.xlu0 %v869, 127
    %v873 = vpop.permute.xlu0 %872
    %v876 = vadd.f32 %v761, %v871
    %v877 = vadd.f32 %v762, %v873
    %v881 = vrot.slane %v851, 2
    %v882 = vrot.slane %v853, 2
    %v883 = vsel %vm753, %v881, %v882
    %v884 = vrot.slane %v855, 2
    %v885 = vsel %vm753, %v882, %v884
    %886 = vrot.lane.b32.xlu0 %v883, 127
    %v887 = vpop.permute.xlu0 %886
    %888 = vrot.lane.b32.xlu0 %v885, 127
    %v889 = vpop.permute.xlu0 %888
    %v892 = vadd.f32 %v773, %v887
    %v893 = vadd.f32 %v774, %v889
    %v894 = vmul.f32 %v103, %v859
    %v895 = vmul.f32 %v104, %v860
    %v896 = vmul.f32 %v105, %v861
    %v897 = vmul.f32 %v106, %v859
    %v898 = vmul.f32 %v107, %v860
    %v899 = vmul.f32 %v108, %v861
    %v900 = vmul.f32 %v109, %v859
    %v901 = vmul.f32 %v110, %v860
    %v902 = vmul.f32 %v111, %v861
    %v903 = vmul.f32 %v112, %v859
    %v904 = vmul.f32 %v113, %v860
    %v905 = vmul.f32 %v114, %v861
    %v918 = vrot.slane %v894, 2
    %v919 = vrot.slane %v895, 2
    %v920 = vsel %vm753, %v918, %v919
    %v921 = vrot.slane %v896, 2
    %v922 = vsel %vm753, %v919, %v921
    %v923 = vrot.slane %v897, 2
    %v924 = vrot.slane %v898, 2
    %v925 = vsel %vm753, %v923, %v924
    %v926 = vrot.slane %v899, 2
    %v927 = vsel %vm753, %v924, %v926
    %v928 = vrot.slane %v900, 2
    %v929 = vrot.slane %v901, 2
    %v930 = vsel %vm753, %v928, %v929
    %v931 = vrot.slane %v902, 2
    %v932 = vsel %vm753, %v929, %v931
    %v933 = vrot.slane %v903, 2
    %v934 = vrot.slane %v904, 2
    %v935 = vsel %vm753, %v933, %v934
    %v936 = vrot.slane %v905, 2
    %v937 = vsel %vm753, %v934, %v936
    %938 = vrot.lane.b32.xlu0 %v920, 127
    %v939 = vpop.permute.xlu0 %938
    %940 = vrot.lane.b32.xlu0 %v922, 127
    %v941 = vpop.permute.xlu0 %940
    %942 = vrot.lane.b32.xlu0 %v925, 127
    %v943 = vpop.permute.xlu0 %942
    %944 = vrot.lane.b32.xlu0 %v927, 127
    %v945 = vpop.permute.xlu0 %944
    %946 = vrot.lane.b32.xlu0 %v930, 127
    %v947 = vpop.permute.xlu0 %946
    %948 = vrot.lane.b32.xlu0 %v932, 127
    %v949 = vpop.permute.xlu0 %948
    %950 = vrot.lane.b32.xlu0 %v935, 127
    %v951 = vpop.permute.xlu0 %950
    %952 = vrot.lane.b32.xlu0 %v937, 127
    %v953 = vpop.permute.xlu0 %952
    %v962 = vadd.f32 %v827, %v939
    %v963 = vadd.f32 %v828, %v941
    %v964 = vadd.f32 %v829, %v943
    %v965 = vadd.f32 %v830, %v945
    %v966 = vadd.f32 %v831, %v947
    %v967 = vadd.f32 %v832, %v949
    %v968 = vadd.f32 %v833, %v951
    %v969 = vadd.f32 %v834, %v953
    %970 = vrot.lane.b32.xlu0 %v712, 1
    %v971 = vpop.permute.xlu0 %970
    %972 = vrot.lane.b32.xlu0 %v714, 1
    %v973 = vpop.permute.xlu0 %972
    %974 = vrot.lane.b32.xlu0 %v716, 1
    %v975 = vpop.permute.xlu0 %974
    %v979 = vsub.f32 %v137, %v971
    %v980 = vsub.f32 %v138, %v973
    %v981 = vsub.f32 %v139, %v975
    %v982 = vmul.f32 %v979, %v979
    %v983 = vmul.f32 %v980, %v980
    %v984 = vmul.f32 %v981, %v981
    %v985 = vsub.f32 0.0, %v982
    %v986 = vsub.f32 0.0, %v983
    %v987 = vsub.f32 0.0, %v984
    %v988 = vmul.f32 %v985, %v161
    %v989 = vmul.f32 %v986, %v161
    %v990 = vmul.f32 %v987, %v161
    %v991 = vmul.f32 %v988, 1.442695
    %v992 = vpow.pop %v991
    %v993 = vmul.f32 %v989, 1.442695
    %v994 = vpow.pop %v993
    %v995 = vmul.f32 %v990, 1.442695
    %v996 = vpow.pop %v995
    %s997 = sadd.s32 %s37, 8
    %s998 = sld [smem:[#allocation3 + %s997]]
    %v999 = vstv %s998
    %v1000 = vmul.f32 %v999, %v992
    %v1001 = vmul.f32 %v999, %v994
    %v1002 = vmul.f32 %v999, %v996
    %v1006 = vrot.slane %v1000, 2
    %v1007 = vrot.slane %v1001, 2
    %v1008 = vsel %vm753, %v1006, %v1007
    %v1009 = vrot.slane %v1002, 2
    %v1010 = vsel %vm753, %v1007, %v1009
    %1011 = vrot.lane.b32.xlu0 %v1008, 126
    %v1012 = vpop.permute.xlu0 %1011
    %1013 = vrot.lane.b32.xlu0 %v1010, 126
    %v1014 = vpop.permute.xlu0 %1013
    %v1017 = vadd.f32 %v876, %v1012
    %v1018 = vadd.f32 %v877, %v1014
    %v1022 = vrot.slane %v992, 2
    %v1023 = vrot.slane %v994, 2
    %v1024 = vsel %vm753, %v1022, %v1023
    %v1025 = vrot.slane %v996, 2
    %v1026 = vsel %vm753, %v1023, %v1025
    %1027 = vrot.lane.b32.xlu0 %v1024, 126
    %v1028 = vpop.permute.xlu0 %1027
    %1029 = vrot.lane.b32.xlu0 %v1026, 126
    %v1030 = vpop.permute.xlu0 %1029
    %v1033 = vadd.f32 %v892, %v1028
    %v1034 = vadd.f32 %v893, %v1030
    %v1035 = vmul.f32 %v103, %v1000
    %v1036 = vmul.f32 %v104, %v1001
    %v1037 = vmul.f32 %v105, %v1002
    %v1038 = vmul.f32 %v106, %v1000
    %v1039 = vmul.f32 %v107, %v1001
    %v1040 = vmul.f32 %v108, %v1002
    %v1041 = vmul.f32 %v109, %v1000
    %v1042 = vmul.f32 %v110, %v1001
    %v1043 = vmul.f32 %v111, %v1002
    %v1044 = vmul.f32 %v112, %v1000
    %v1045 = vmul.f32 %v113, %v1001
    %v1046 = vmul.f32 %v114, %v1002
    %v1059 = vrot.slane %v1035, 2
    %v1060 = vrot.slane %v1036, 2
    %v1061 = vsel %vm753, %v1059, %v1060
    %v1062 = vrot.slane %v1037, 2
    %v1063 = vsel %vm753, %v1060, %v1062
    %v1064 = vrot.slane %v1038, 2
    %v1065 = vrot.slane %v1039, 2
    %v1066 = vsel %vm753, %v1064, %v1065
    %v1067 = vrot.slane %v1040, 2
    %v1068 = vsel %vm753, %v1065, %v1067
    %v1069 = vrot.slane %v1041, 2
    %v1070 = vrot.slane %v1042, 2
    %v1071 = vsel %vm753, %v1069, %v1070
    %v1072 = vrot.slane %v1043, 2
    %v1073 = vsel %vm753, %v1070, %v1072
    %v1074 = vrot.slane %v1044, 2
    %v1075 = vrot.slane %v1045, 2
    %v1076 = vsel %vm753, %v1074, %v1075
    %v1077 = vrot.slane %v1046, 2
    %v1078 = vsel %vm753, %v1075, %v1077
    %1079 = vrot.lane.b32.xlu0 %v1061, 126
    %v1080 = vpop.permute.xlu0 %1079
    %1081 = vrot.lane.b32.xlu0 %v1063, 126
    %v1082 = vpop.permute.xlu0 %1081
    %1083 = vrot.lane.b32.xlu0 %v1066, 126
    %v1084 = vpop.permute.xlu0 %1083
    %1085 = vrot.lane.b32.xlu0 %v1068, 126
    %v1086 = vpop.permute.xlu0 %1085
    %1087 = vrot.lane.b32.xlu0 %v1071, 126
    %v1088 = vpop.permute.xlu0 %1087
    %1089 = vrot.lane.b32.xlu0 %v1073, 126
    %v1090 = vpop.permute.xlu0 %1089
    %1091 = vrot.lane.b32.xlu0 %v1076, 126
    %v1092 = vpop.permute.xlu0 %1091
    %1093 = vrot.lane.b32.xlu0 %v1078, 126
    %v1094 = vpop.permute.xlu0 %1093
    %v1103 = vadd.f32 %v962, %v1080
    %v1104 = vadd.f32 %v963, %v1082
    %v1105 = vadd.f32 %v964, %v1084
    %v1106 = vadd.f32 %v965, %v1086
    %v1107 = vadd.f32 %v966, %v1088
    %v1108 = vadd.f32 %v967, %v1090
    %v1109 = vadd.f32 %v968, %v1092
    %v1110 = vadd.f32 %v969, %v1094
    %v1111 = vmul.f32 %v1033, 1e-08
    %v1112 = vmul.f32 %v1034, 1e-08
    %v1113 = vadd.f32 %v1017, %v1111
    %v1114 = vadd.f32 %v1018, %v1112
    %v1115 = vrcp.pop %v1113
    %v1116 = vrcp.pop %v1114
    %v1117 = vmul.f32 %v1113, %v1115
    %v1118 = vmul.f32 %v1114, %v1116
    %v1119 = vsub.f32 2.0, %v1117
    %v1120 = vsub.f32 2.0, %v1118
    %v1121 = vmul.f32 %v1115, %v1119
    %v1122 = vmul.f32 %v1116, %v1120
    %v1123 = vmul.f32 %v1103, %v1121
    %v1124 = vmul.f32 %v1104, %v1122
    %v1125 = vmul.f32 %v1105, %v1121
    %v1126 = vmul.f32 %v1106, %v1122
    %v1127 = vmul.f32 %v1107, %v1121
    %v1128 = vmul.f32 %v1108, %v1122
    %v1129 = vmul.f32 %v1109, %v1121
    %v1130 = vmul.f32 %v1110, %v1122
    %vm1131 = vcmask 130048
    %1132 = vst.msk [vmem:[#allocation8] sm:$0xff] %vm1131, %v1123
    %1133 = vst.msk [vmem:[#allocation8 + $0x8] sm:$0xff] %vm1131, %v1124
    %1134 = vst.msk [vmem:[#allocation8 + $0x10] sm:$0xff] %vm1131, %v1125
    %1135 = vst.msk [vmem:[#allocation8 + $0x18] sm:$0xff] %vm1131, %v1126
    %1136 = vst.msk [vmem:[#allocation8 + $0x20] sm:$0xff] %vm1131, %v1127
    %1137 = vst.msk [vmem:[#allocation8 + $0x28] sm:$0xff] %vm1131, %v1128
    %1138 = vst.msk [vmem:[#allocation8 + $0x30] sm:$0xff] %vm1131, %v1129
    %1139 = vst.msk [vmem:[#allocation8 + $0x38] sm:$0xff] %vm1131, %v1130
    // Predicated region
    $region18: #{tpu_custom_call.1} parent=1 // pred_check
      _
    $region19: #{tpu_custom_call.1} parent=1 // pred_check_branch
      %1141 = sbr.rel (0) target = $region21
    $region20: #{tpu_custom_call.1} parent=1 // pred_region
      %s1143 = ssub.s32 1024, 1024
      %1144 = vsyncadd [#allocation5], %s1143
      %s1145 = sshll.u32 [#allocation8], 4
      %s1146 = int_to_ptr.vmem [resolvable:$true] %s1145
      %1151 = dma.vmem_to_hbm [thread:$0]  %s1146, 1024, %s2, [#allocation5], 128, 128, 8
    $region21: #{tpu_custom_call.1} parent=1 // pred_fallthru
      _
    // Predicated region
    $region22: #{tpu_custom_call.1} parent=1 // pred_check
      _
    $region23: #{tpu_custom_call.1} parent=1 // pred_check_branch
      %1153 = sbr.rel (0) target = $region25
    $region24: #{tpu_custom_call.1} parent=1 // pred_region
      %1154 = dma.done [#allocation5], 1024
    $region25: #{tpu_custom_call.1} parent=1 // pred_fallthru
      _
    %1155 = vsyncpa [#allocation4], 1
    %1156 = vsyncpa [#allocation5], 1
    %1157 = vsyncpa [#allocation6], 1

</llo_original>
